<compile_context>
chip_gen: v7x
topology: tpu7x:2x2x1
jax: 0.10.0
libtpu: 0.0.40
codegen_flags: <defaults>
</compile_context>

<pallas_src>
import jax
import jax.numpy as jnp
from jax.experimental import pallas as pl
from jax.experimental.pallas import tpu as pltpu

HID = 128      # hidden width
N_OUT = 2      # number of Q-values (actions)
N_PAD = 128    # fc3 weight padded to a full lane width (MXU-friendly)


def dqn_kernel(x_ref, w1_ref, b1_ref, w2_ref, b2_ref, w3_ref, b3_ref, o_ref):
    # fc1 + ReLU: (tb, 4) x (4, 128) on the MXU (tiny contracting dim is
    # zero-padded by Mosaic; the MXU has huge slack in this kernel).
    # bf16 inputs, f32 accumulation, f32 bias / ReLU.
    h1 = jnp.dot(x_ref[...].astype(jnp.bfloat16), w1_ref[...],
                 preferred_element_type=jnp.float32)
    h1 = jnp.maximum(h1 + b1_ref[...], 0.0)

    # fc2 + ReLU: bf16 MXU matmul, f32 accumulation.
    h2 = jnp.dot(h1.astype(jnp.bfloat16), w2_ref[...],
                 preferred_element_type=jnp.float32)
    h2 = jnp.maximum(h2 + b2_ref[...], 0.0)

    # fc3: the padded (128, 128) weight keeps the matmul lane-dense on the
    # MXU; only the first N_OUT columns are biased and stored, giving a
    # compact (tb, 2) output (no 64x padded HBM writeback, no wrapper slice).
    q = jnp.dot(h2.astype(jnp.bfloat16), w3_ref[...],
                preferred_element_type=jnp.float32)
    o_ref[...] = (q[:, :N_OUT] + b3_ref[...]).astype(o_ref.dtype)
    # TODO(synk): for greedy action selection (sample_action), fuse the argmax
    # over the 2 Q-values here and emit an int32 action instead of Q-values;
    # the epsilon-greedy coin flip is host-side Python and stays outside.


def _round_up(n, m):
    return ((n + m - 1) // m) * m


def dqn_forward(x, kernel_params, tb=512):
    """x: (B, 4) f32 batch of states. Returns (B, 2) f32 Q-values."""
    w1, b1, w2, b2, w3p, b3 = kernel_params
    B = x.shape[0]

    B8 = _round_up(B, 8)
    # Cap the batch tile so the grid has >= 2 steps whenever the batch allows
    # it: with dimension_semantics=("parallel",) the two v7x TensorCores each
    # take a slice of the grid. Large tb amortizes per-step overhead; VMEM is
    # not a constraint (resident weights ~35 KiB, streamed blocks << limits).
    tb = max(8, min(tb, _round_up(pl.cdiv(B8, 2), 8)))
    Bp = _round_up(B8, tb)
    if Bp != B:
        x = jnp.pad(x, ((0, Bp - B), (0, 0)))

    out = pl.pallas_call(
        dqn_kernel,
        out_shape=jax.ShapeDtypeStruct((Bp, N_OUT), jnp.float32),
        grid=(Bp // tb,),
        in_specs=[
            pl.BlockSpec((tb, 4), lambda i: (i, 0)),       # x tile (streamed)
            pl.BlockSpec((4, HID), lambda i: (0, 0)),      # w1 (VMEM-resident)
            pl.BlockSpec((1, HID), lambda i: (0, 0)),      # b1
            pl.BlockSpec((HID, HID), lambda i: (0, 0)),    # w2 (VMEM-resident)
            pl.BlockSpec((1, HID), lambda i: (0, 0)),      # b2
            pl.BlockSpec((HID, N_PAD), lambda i: (0, 0)),  # w3 padded (resident)
            pl.BlockSpec((1, N_OUT), lambda i: (0, 0)),    # b3 (compact)
        ],
        out_specs=pl.BlockSpec((tb, N_OUT), lambda i: (i, 0)),
        compiler_params=pltpu.CompilerParams(
            dimension_semantics=("parallel",)),
    )(x, w1, b1, w2, b2, w3p, b3)

    return out if Bp == B else out[:B]


def init_params(key):
    """Deterministic init mimicking PyTorch's default nn.Linear init
    (uniform(-1/sqrt(fan_in), 1/sqrt(fan_in))), stored as (in, out) / (1, out)."""
    dims = [(4, HID), (HID, HID), (HID, N_OUT)]
    params = []
    for fan_in, fan_out in dims:
        key, kw, kb = jax.random.split(key, 3)
        bound = 1.0 / jnp.sqrt(fan_in)
        w = jax.random.uniform(kw, (fan_in, fan_out), jnp.float32, -bound, bound)
        b = jax.random.uniform(kb, (1, fan_out), jnp.float32, -bound, bound)
        params.extend([w, b])
    return tuple(params)


def prepare_params(params):
    """Cast weights to bf16 (f32 accumulation in-kernel) and zero-pad fc3's
    weight to 128 output columns (lane-dense MXU matmul). Biases stay f32 and
    the fc3 bias stays compact (1, 2) since the kernel stores a compact output."""
    w1, b1, w2, b2, w3, b3 = params
    w3p = jnp.pad(w3, ((0, 0), (0, N_PAD - w3.shape[1]))).astype(jnp.bfloat16)
    return (w1.astype(jnp.bfloat16), b1,
            w2.astype(jnp.bfloat16), b2,
            w3p, b3)


def dqn_reference(x, kernel_params):
    """Pure-JAX reference matching the kernel's arithmetic (bf16 matmul inputs,
    f32 accumulation, f32 bias/ReLU)."""
    w1, b1, w2, b2, w3p, b3 = kernel_params
    xb = x.astype(jnp.bfloat16).astype(jnp.float32)
    h1 = jnp.maximum(xb @ w1.astype(jnp.float32) + b1, 0.0)
    h1 = h1.astype(jnp.bfloat16).astype(jnp.float32)
    h2 = jnp.maximum(h1 @ w2.astype(jnp.float32) + b2, 0.0)
    h2 = h2.astype(jnp.bfloat16).astype(jnp.float32)
    q = h2 @ w3p.astype(jnp.float32)
    return q[:, :N_OUT] + b3


def dqn_reference_f32(x, params):
    """Plain f32 reference (PyTorch-equivalent forward)."""
    w1, b1, w2, b2, w3, b3 = params
    h1 = jnp.maximum(x @ w1 + b1, 0.0)
    h2 = jnp.maximum(h1 @ w2 + b2, 0.0)
    return h2 @ w3 + b3


if __name__ == "__main__":
    key = jax.random.PRNGKey(0)
    key, kx = jax.random.split(key)

    B = 256  # batch of CartPole-like 4-feature states; exercises a 2-step grid
    x = jax.random.normal(kx, (B, 4), dtype=jnp.float32)

    params = init_params(key)
    kernel_params = prepare_params(params)

    out = dqn_forward(x, kernel_params)
    out = jax.block_until_ready(out)

    assert out.shape == (B, N_OUT), out.shape

    # Exact-arithmetic reference (same bf16/f32 mix as the kernel).
    ref = dqn_reference(x, kernel_params)
    assert jnp.allclose(out, ref, atol=1e-4, rtol=1e-4), "mismatch vs bf16 reference"

    # Sanity check against the pure-f32 PyTorch-style forward
    # (bf16 weight + activation rounding tolerance).
    ref32 = dqn_reference_f32(x, params)
    assert jnp.allclose(out, ref32, atol=5e-2, rtol=5e-2), "drifted from f32 reference"

    print("KERNEL_OK")
</pallas_src>

<mosaic_0001>
module attributes {stable_mosaic.version = 11 : i64} {
  func.func @dqn_kernel(%arg0: i32, %arg1: memref<128x4xf32, #tpu.memory_space<vmem>>, %arg2: memref<4x128xbf16, #tpu.memory_space<vmem>>, %arg3: memref<1x128xf32, #tpu.memory_space<vmem>>, %arg4: memref<128x128xbf16, #tpu.memory_space<vmem>>, %arg5: memref<1x128xf32, #tpu.memory_space<vmem>>, %arg6: memref<128x128xbf16, #tpu.memory_space<vmem>>, %arg7: memref<1x2xf32, #tpu.memory_space<vmem>>, %arg8: memref<128x2xf32, #tpu.memory_space<vmem>>) attributes {dimension_semantics = [#tpu.dimension_semantics<parallel>], iteration_bounds = array<i64: 2>, scalar_prefetch = 0 : i64, scratch_operands = 0 : i64, tpu.core_type = #tpu.core_type<tc>, window_params = [{transform_indices = @transform_0, window_bounds = array<i64: 128, 4>}, {pipeline_mode = #tpu.pipeline_mode<synchronous>, transform_indices = @transform_1, window_bounds = array<i64: 4, 128>}, {pipeline_mode = #tpu.pipeline_mode<synchronous>, transform_indices = @transform_2, window_bounds = array<i64: 1, 128>}, {pipeline_mode = #tpu.pipeline_mode<synchronous>, transform_indices = @transform_3, window_bounds = array<i64: 128, 128>}, {pipeline_mode = #tpu.pipeline_mode<synchronous>, transform_indices = @transform_4, window_bounds = array<i64: 1, 128>}, {pipeline_mode = #tpu.pipeline_mode<synchronous>, transform_indices = @transform_5, window_bounds = array<i64: 128, 128>}, {pipeline_mode = #tpu.pipeline_mode<synchronous>, transform_indices = @transform_6, window_bounds = array<i64: 1, 2>}, {transform_indices = @transform_7, window_bounds = array<i64: 128, 2>}]} {
    %c0 = arith.constant 0 : index
    %c0_0 = arith.constant 0 : index
    %0 = vector.load %arg1[%c0, %c0_0] : memref<128x4xf32, #tpu.memory_space<vmem>>, vector<128x4xf32>
    %1 = arith.truncf %0 : vector<128x4xf32> to vector<128x4xbf16>
    %c0_1 = arith.constant 0 : index
    %c0_2 = arith.constant 0 : index
    %2 = vector.load %arg2[%c0_1, %c0_2] : memref<4x128xbf16, #tpu.memory_space<vmem>>, vector<4x128xbf16>
    %cst = arith.constant dense<0.000000e+00> : vector<128x128xf32>
    %3 = tpu.matmul %1, %2, %cst {dimension_numbers = #tpu.dot_dimension_numbers<[1], [0], [0], [1], [0, 0, 1, 1], [], []>} : vector<128x4xbf16>, vector<4x128xbf16>, vector<128x128xf32> -> vector<128x128xf32>
    %c0_3 = arith.constant 0 : index
    %c0_4 = arith.constant 0 : index
    %4 = vector.load %arg3[%c0_3, %c0_4] : memref<1x128xf32, #tpu.memory_space<vmem>>, vector<1x128xf32>
    %5 = vector.broadcast %4 : vector<1x128xf32> to vector<128x128xf32>
    %6 = arith.addf %3, %5 : vector<128x128xf32>
    %cst_5 = arith.constant 0.000000e+00 : f32
    %7 = vector.broadcast %cst_5 : f32 to vector<128x128xf32>
    %8 = arith.maximumf %6, %7 : vector<128x128xf32>
    %9 = arith.truncf %8 : vector<128x128xf32> to vector<128x128xbf16>
    %c0_6 = arith.constant 0 : index
    %c0_7 = arith.constant 0 : index
    %10 = vector.load %arg4[%c0_6, %c0_7] : memref<128x128xbf16, #tpu.memory_space<vmem>>, vector<128x128xbf16>
    %cst_8 = arith.constant dense<0.000000e+00> : vector<128x128xf32>
    %11 = tpu.matmul %9, %10, %cst_8 {dimension_numbers = #tpu.dot_dimension_numbers<[1], [0], [0], [1], [0, 0, 1, 1], [], []>} : vector<128x128xbf16>, vector<128x128xbf16>, vector<128x128xf32> -> vector<128x128xf32>
    %c0_9 = arith.constant 0 : index
    %c0_10 = arith.constant 0 : index
    %12 = vector.load %arg5[%c0_9, %c0_10] : memref<1x128xf32, #tpu.memory_space<vmem>>, vector<1x128xf32>
    %13 = vector.broadcast %12 : vector<1x128xf32> to vector<128x128xf32>
    %14 = arith.addf %11, %13 : vector<128x128xf32>
    %cst_11 = arith.constant 0.000000e+00 : f32
    %15 = vector.broadcast %cst_11 : f32 to vector<128x128xf32>
    %16 = arith.maximumf %14, %15 : vector<128x128xf32>
    %17 = arith.truncf %16 : vector<128x128xf32> to vector<128x128xbf16>
    %c0_12 = arith.constant 0 : index
    %c0_13 = arith.constant 0 : index
    %18 = vector.load %arg6[%c0_12, %c0_13] : memref<128x128xbf16, #tpu.memory_space<vmem>>, vector<128x128xbf16>
    %cst_14 = arith.constant dense<0.000000e+00> : vector<128x128xf32>
    %19 = tpu.matmul %17, %18, %cst_14 {dimension_numbers = #tpu.dot_dimension_numbers<[1], [0], [0], [1], [0, 0, 1, 1], [], []>} : vector<128x128xbf16>, vector<128x128xbf16>, vector<128x128xf32> -> vector<128x128xf32>
    %20 = vector.extract_strided_slice %19 {offsets = [0, 0], sizes = [128, 2], strides = [1, 1]} : vector<128x128xf32> to vector<128x2xf32>
    %c0_15 = arith.constant 0 : index
    %c0_16 = arith.constant 0 : index
    %21 = vector.load %arg7[%c0_15, %c0_16] : memref<1x2xf32, #tpu.memory_space<vmem>>, vector<1x2xf32>
    %22 = vector.broadcast %21 : vector<1x2xf32> to vector<128x2xf32>
    %23 = arith.addf %20, %22 : vector<128x2xf32>
    %c0_17 = arith.constant 0 : index
    %c0_18 = arith.constant 0 : index
    %24 = vector.load %arg8[%c0_17, %c0_18] : memref<128x2xf32, #tpu.memory_space<vmem>>, vector<128x2xf32>
    tpu.vector_store %arg8[%c0_17, %c0_18], %23 {strides = array<i32>} : memref<128x2xf32, #tpu.memory_space<vmem>>, vector<128x2xf32>,
    return
  }
  func.func @transform_0(%arg0: i32) -> (i32, i32) {
    %c0_i32 = arith.constant 0 : i32
    %c0_i32_0 = arith.constant 0 : i32
    return %arg0, %c0_i32 : i32, i32
  }
  func.func @transform_1(%arg0: i32) -> (i32, i32) {
    %c0_i32 = arith.constant 0 : i32
    %c0_i32_0 = arith.constant 0 : i32
    %c0_i32_1 = arith.constant 0 : i32
    return %c0_i32, %c0_i32_0 : i32, i32
  }
  func.func @transform_2(%arg0: i32) -> (i32, i32) {
    %c0_i32 = arith.constant 0 : i32
    %c0_i32_0 = arith.constant 0 : i32
    %c0_i32_1 = arith.constant 0 : i32
    return %c0_i32, %c0_i32_0 : i32, i32
  }
  func.func @transform_3(%arg0: i32) -> (i32, i32) {
    %c0_i32 = arith.constant 0 : i32
    %c0_i32_0 = arith.constant 0 : i32
    %c0_i32_1 = arith.constant 0 : i32
    return %c0_i32, %c0_i32_0 : i32, i32
  }
  func.func @transform_4(%arg0: i32) -> (i32, i32) {
    %c0_i32 = arith.constant 0 : i32
    %c0_i32_0 = arith.constant 0 : i32
    %c0_i32_1 = arith.constant 0 : i32
    return %c0_i32, %c0_i32_0 : i32, i32
  }
  func.func @transform_5(%arg0: i32) -> (i32, i32) {
    %c0_i32 = arith.constant 0 : i32
    %c0_i32_0 = arith.constant 0 : i32
    %c0_i32_1 = arith.constant 0 : i32
    return %c0_i32, %c0_i32_0 : i32, i32
  }
  func.func @transform_6(%arg0: i32) -> (i32, i32) {
    %c0_i32 = arith.constant 0 : i32
    %c0_i32_0 = arith.constant 0 : i32
    %c0_i32_1 = arith.constant 0 : i32
    return %c0_i32, %c0_i32_0 : i32, i32
  }
  func.func @transform_7(%arg0: i32) -> (i32, i32) {
    %c0_i32 = arith.constant 0 : i32
    %c0_i32_0 = arith.constant 0 : i32
    return %arg0, %c0_i32 : i32, i32
  }
}

</mosaic_0001>

<llo_original>
// kernel: tpu_custom_call.1
$region0: #{tpu_custom_call.1}
  #allocation0 [shape = 'u32[]', space=smem, size = 0x4, offset = 0x4, fixed_abs, tag = 'smem constant byte address 0x4 - core index']
  #allocation1 [shape = 'u32[144,128]{1,0:T(1,128)}', space=vmem, size = 0x12000, scoped, tag = 'internal scratch']
  %s0 = inlined_call_operand.vmem [shape: f32[256,4], index: 0, kind: input, shape index: {}]
  %s1 = inlined_call_operand.vmem [shape: bf16[4,128], index: 1, kind: input, shape index: {}]
  %s2 = inlined_call_operand.vmem [shape: f32[1,128], index: 2, kind: input, shape index: {}]
  %s3 = inlined_call_operand.vmem [shape: bf16[128,128], index: 3, kind: input, shape index: {}]
  %s4 = inlined_call_operand.vmem [shape: f32[1,128], index: 4, kind: input, shape index: {}]
  %s5 = inlined_call_operand.vmem [shape: bf16[128,128], index: 5, kind: input, shape index: {}]
  %s6 = inlined_call_operand.vmem [shape: f32[1,2], index: 6, kind: input, shape index: {}]
  %s7 = inlined_call_operand.vmem [shape: f32[256,2], index: 7, kind: output, shape index: {}]
  %s8 = sld [smem:[#allocation0]]
  $region61: #{tpu_custom_call.1} parent=0
    _
  %s10 = ssub.s32 1, %s8
  %s11 = scalar_select 0, %s10, %s8
  loop: start=0, step=1, limit=4
  $region2: #{tpu_custom_call.1} parent=0 // loop_pre_header
    _
  $region3: #{tpu_custom_call.1} parent=0 // loop_header
    %s13 = sphi 0, %s17
    %p14 = scmp.ge.s32.totalorder %s13, 4
    %s23 = sphi 0, %s25
    %s26 = sphi 0, %s23
    %s27 = sphi 0, %s26
    %s43 = sphi 0, %s27
    %s47 = sphi 0, %s47
    %s49 = sphi 0, %s47
    %s50 = sphi 0, %s49
    %s64 = sphi 0, %s50
    %s68 = sphi 0, %s68
    %s70 = sphi 0, %s68
    %s71 = sphi 0, %s70
    %s85 = sphi 0, %s71
    %s89 = sphi 0, %s89
    %s91 = sphi 0, %s89
    %s92 = sphi 0, %s91
    %s106 = sphi 0, %s92
    %s110 = sphi 0, %s110
    %s112 = sphi 0, %s110
    %s113 = sphi 0, %s112
    %s127 = sphi 0, %s113
    %s131 = sphi 0, %s131
    %s133 = sphi 0, %s131
    %s134 = sphi 0, %s133
    %s148 = sphi 0, %s134
    %s152 = sphi 0, %s152
    %s154 = sphi 0, %s152
    %s155 = sphi 0, %s154
    %s169 = sphi 0, %s155
    %s175 = sphi 0, %s177
    %s178 = sphi 0, %s175
    %s179 = sphi 0, %s178
    %s195 = sphi 0, %s179
  $region4: #{tpu_custom_call.1} parent=0 // loop_header_branch
    %16 = sbr.rel (%p14) target = $region8
  $region5: #{tpu_custom_call.1} parent=0 // loop_body
    %s18 = ssub.s32 %s13, 1
    %s19 = ssub.s32 %s13, 2
    %s20 = sadd.s32 %s13, 1
    %s21 = ssub.s32 %s13, %s20
    %p22 = scmp.eq.s32.totalorder %s21, 0
    %s24 = sadd.s32 %s23, 1
    %s25 = scalar_select %p22, %s23, %s24
    %p28 = pneg %p22
    %p29 = scmp.eq.s32.totalorder %s13, 1
    %p30 = por %p28, %p29
    %p31 = scmp.ne.s32.totalorder %s23, %s26
    %p32 = scmp.eq.s32.totalorder %s13, 0
    %p33 = por %p31, %p32
    %p34 = scmp.ne.s32.totalorder %s23, %s26
    %p35 = scmp.eq.s32.totalorder %s18, 1
    %p36 = por %p34, %p35
    %p37 = scmp.ne.s32.totalorder %s26, %s27
    %p38 = scmp.eq.s32.totalorder %s18, 0
    %p39 = por %p37, %p38
    %p40 = scmp.ne.s32.totalorder %s26, %s27
    %p41 = scmp.eq.s32.totalorder %s19, 1
    %p42 = por %p40, %p41
    %p44 = scmp.ne.s32.totalorder %s27, %s43
    %p45 = scmp.eq.s32.totalorder %s19, 0
    %p46 = por %p44, %p45
    %s48 = sadd.s32 %s47, 1
    %p51 = scmp.eq.s32.totalorder %s13, 1
    %p52 = scmp.ne.s32.totalorder %s47, %s49
    %p53 = scmp.eq.s32.totalorder %s13, 0
    %p54 = por %p52, %p53
    %p55 = scmp.ne.s32.totalorder %s47, %s49
    %p56 = scmp.eq.s32.totalorder %s18, 1
    %p57 = por %p55, %p56
    %p58 = scmp.ne.s32.totalorder %s49, %s50
    %p59 = scmp.eq.s32.totalorder %s18, 0
    %p60 = por %p58, %p59
    %p61 = scmp.ne.s32.totalorder %s49, %s50
    %p62 = scmp.eq.s32.totalorder %s19, 1
    %p63 = por %p61, %p62
    %p65 = scmp.ne.s32.totalorder %s50, %s64
    %p66 = scmp.eq.s32.totalorder %s19, 0
    %p67 = por %p65, %p66
    %s69 = sadd.s32 %s68, 1
    %p72 = scmp.eq.s32.totalorder %s13, 1
    %p73 = scmp.ne.s32.totalorder %s68, %s70
    %p74 = scmp.eq.s32.totalorder %s13, 0
    %p75 = por %p73, %p74
    %p76 = scmp.ne.s32.totalorder %s68, %s70
    %p77 = scmp.eq.s32.totalorder %s18, 1
    %p78 = por %p76, %p77
    %p79 = scmp.ne.s32.totalorder %s70, %s71
    %p80 = scmp.eq.s32.totalorder %s18, 0
    %p81 = por %p79, %p80
    %p82 = scmp.ne.s32.totalorder %s70, %s71
    %p83 = scmp.eq.s32.totalorder %s19, 1
    %p84 = por %p82, %p83
    %p86 = scmp.ne.s32.totalorder %s71, %s85
    %p87 = scmp.eq.s32.totalorder %s19, 0
    %p88 = por %p86, %p87
    %s90 = sadd.s32 %s89, 1
    %p93 = scmp.eq.s32.totalorder %s13, 1
    %p94 = scmp.ne.s32.totalorder %s89, %s91
    %p95 = scmp.eq.s32.totalorder %s13, 0
    %p96 = por %p94, %p95
    %p97 = scmp.ne.s32.totalorder %s89, %s91
    %p98 = scmp.eq.s32.totalorder %s18, 1
    %p99 = por %p97, %p98
    %p100 = scmp.ne.s32.totalorder %s91, %s92
    %p101 = scmp.eq.s32.totalorder %s18, 0
    %p102 = por %p100, %p101
    %p103 = scmp.ne.s32.totalorder %s91, %s92
    %p104 = scmp.eq.s32.totalorder %s19, 1
    %p105 = por %p103, %p104
    %p107 = scmp.ne.s32.totalorder %s92, %s106
    %p108 = scmp.eq.s32.totalorder %s19, 0
    %p109 = por %p107, %p108
    %s111 = sadd.s32 %s110, 1
    %p114 = scmp.eq.s32.totalorder %s13, 1
    %p115 = scmp.ne.s32.totalorder %s110, %s112
    %p116 = scmp.eq.s32.totalorder %s13, 0
    %p117 = por %p115, %p116
    %p118 = scmp.ne.s32.totalorder %s110, %s112
    %p119 = scmp.eq.s32.totalorder %s18, 1
    %p120 = por %p118, %p119
    %p121 = scmp.ne.s32.totalorder %s112, %s113
    %p122 = scmp.eq.s32.totalorder %s18, 0
    %p123 = por %p121, %p122
    %p124 = scmp.ne.s32.totalorder %s112, %s113
    %p125 = scmp.eq.s32.totalorder %s19, 1
    %p126 = por %p124, %p125
    %p128 = scmp.ne.s32.totalorder %s113, %s127
    %p129 = scmp.eq.s32.totalorder %s19, 0
    %p130 = por %p128, %p129
    %s132 = sadd.s32 %s131, 1
    %p135 = scmp.eq.s32.totalorder %s13, 1
    %p136 = scmp.ne.s32.totalorder %s131, %s133
    %p137 = scmp.eq.s32.totalorder %s13, 0
    %p138 = por %p136, %p137
    %p139 = scmp.ne.s32.totalorder %s131, %s133
    %p140 = scmp.eq.s32.totalorder %s18, 1
    %p141 = por %p139, %p140
    %p142 = scmp.ne.s32.totalorder %s133, %s134
    %p143 = scmp.eq.s32.totalorder %s18, 0
    %p144 = por %p142, %p143
    %p145 = scmp.ne.s32.totalorder %s133, %s134
    %p146 = scmp.eq.s32.totalorder %s19, 1
    %p147 = por %p145, %p146
    %p149 = scmp.ne.s32.totalorder %s134, %s148
    %p150 = scmp.eq.s32.totalorder %s19, 0
    %p151 = por %p149, %p150
    %s153 = sadd.s32 %s152, 1
    %p156 = scmp.eq.s32.totalorder %s13, 1
    %p157 = scmp.ne.s32.totalorder %s152, %s154
    %p158 = scmp.eq.s32.totalorder %s13, 0
    %p159 = por %p157, %p158
    %p160 = scmp.ne.s32.totalorder %s152, %s154
    %p161 = scmp.eq.s32.totalorder %s18, 1
    %p162 = por %p160, %p161
    %p163 = scmp.ne.s32.totalorder %s154, %s155
    %p164 = scmp.eq.s32.totalorder %s18, 0
    %p165 = por %p163, %p164
    %p166 = scmp.ne.s32.totalorder %s154, %s155
    %p167 = scmp.eq.s32.totalorder %s19, 1
    %p168 = por %p166, %p167
    %p170 = scmp.ne.s32.totalorder %s155, %s169
    %p171 = scmp.eq.s32.totalorder %s19, 0
    %p172 = por %p170, %p171
    %s173 = ssub.s32 %s13, %s20
    %p174 = scmp.eq.s32.totalorder %s173, 0
    %s176 = sadd.s32 %s175, 1
    %s177 = scalar_select %p174, %s175, %s176
    %p180 = pneg %p174
    %p181 = scmp.eq.s32.totalorder %s13, 1
    %p182 = por %p180, %p181
    %p183 = scmp.ne.s32.totalorder %s175, %s178
    %p184 = scmp.eq.s32.totalorder %s13, 0
    %p185 = por %p183, %p184
    %p186 = scmp.ne.s32.totalorder %s175, %s178
    %p187 = scmp.eq.s32.totalorder %s18, 1
    %p188 = por %p186, %p187
    %p189 = scmp.ne.s32.totalorder %s178, %s179
    %p190 = scmp.eq.s32.totalorder %s18, 0
    %p191 = por %p189, %p190
    %p192 = scmp.ne.s32.totalorder %s178, %s179
    %p193 = scmp.eq.s32.totalorder %s19, 1
    %p194 = por %p192, %p193
    %p196 = scmp.ne.s32.totalorder %s179, %s195
    %p197 = scmp.eq.s32.totalorder %s19, 0
    %p198 = por %p196, %p197
    %p199 = scmp.le.s32.totalorder 1, %s13
    %p200 = scmp.lt.s32.totalorder %s13, 3
    %p201 = pnand %p199, %p200
    %p202 = pneg %p201
    // Predicated region
    $region9: #{tpu_custom_call.1} parent=5 // pred_check
      _
    $region10: #{tpu_custom_call.1} parent=5 // pred_check_branch
      %204 = sbr.rel (%p201) target = $region12
    $region11: #{tpu_custom_call.1} parent=5 // pred_region
      %s205 = ssub.s32 %s13, 1
      // Predicated region
      $region13: #{tpu_custom_call.1} parent=11 // pred_check
        %p206 = pneg %p60
      $region14: #{tpu_custom_call.1} parent=11 // pred_check_branch
        %208 = sbr.rel (%p206) target = $region16
      $region15: #{tpu_custom_call.1} parent=11 // pred_region
        _
      $region16: #{tpu_custom_call.1} parent=11 // pred_fallthru
        _
      // Predicated region
      $region17: #{tpu_custom_call.1} parent=11 // pred_check
        %p209 = pneg %p81
      $region18: #{tpu_custom_call.1} parent=11 // pred_check_branch
        %211 = sbr.rel (%p209) target = $region20
      $region19: #{tpu_custom_call.1} parent=11 // pred_region
        _
      $region20: #{tpu_custom_call.1} parent=11 // pred_fallthru
        _
      // Predicated region
      $region21: #{tpu_custom_call.1} parent=11 // pred_check
        %p212 = pneg %p102
      $region22: #{tpu_custom_call.1} parent=11 // pred_check_branch
        %214 = sbr.rel (%p212) target = $region24
      $region23: #{tpu_custom_call.1} parent=11 // pred_region
        _
      $region24: #{tpu_custom_call.1} parent=11 // pred_fallthru
        _
      // Predicated region
      $region25: #{tpu_custom_call.1} parent=11 // pred_check
        %p215 = pneg %p123
      $region26: #{tpu_custom_call.1} parent=11 // pred_check_branch
        %217 = sbr.rel (%p215) target = $region28
      $region27: #{tpu_custom_call.1} parent=11 // pred_region
        _
      $region28: #{tpu_custom_call.1} parent=11 // pred_fallthru
        _
      // Predicated region
      $region29: #{tpu_custom_call.1} parent=11 // pred_check
        %p218 = pneg %p144
      $region30: #{tpu_custom_call.1} parent=11 // pred_check_branch
        %220 = sbr.rel (%p218) target = $region32
      $region31: #{tpu_custom_call.1} parent=11 // pred_region
        _
      $region32: #{tpu_custom_call.1} parent=11 // pred_fallthru
        _
      // Predicated region
      $region33: #{tpu_custom_call.1} parent=11 // pred_check
        %p221 = pneg %p165
      $region34: #{tpu_custom_call.1} parent=11 // pred_check_branch
        %223 = sbr.rel (%p221) target = $region36
      $region35: #{tpu_custom_call.1} parent=11 // pred_region
        _
      $region36: #{tpu_custom_call.1} parent=11 // pred_fallthru
        _
    $region12: #{tpu_custom_call.1} parent=5 // pred_fallthru
      _
    %p224 = scmp.lt.s32.totalorder %s13, 2
    // Predicated region
    $region37: #{tpu_custom_call.1} parent=5 // pred_check
      %p225 = pneg %p224
    $region38: #{tpu_custom_call.1} parent=5 // pred_check_branch
      %227 = sbr.rel (%p225) target = $region40
    $region39: #{tpu_custom_call.1} parent=5 // pred_region
      // Predicated region
      $region41: #{tpu_custom_call.1} parent=39 // pred_check
        %p228 = pneg %p33
      $region42: #{tpu_custom_call.1} parent=39 // pred_check_branch
        %230 = sbr.rel (%p228) target = $region44
      $region43: #{tpu_custom_call.1} parent=39 // pred_region
        %s231 = smul.u32 16, %s13
        %p232 = scmp.lt.s32.totalorder %s231, 31
        %s233 = scalar_select %p232, %s231, 31
        %s234 = smul.addr %s233, 8
        %s235 = scalar_lea.vmem %s0, %s234
        %s236 = smul.u32 16, %s13
      $region44: #{tpu_custom_call.1} parent=39 // pred_fallthru
        _
    $region40: #{tpu_custom_call.1} parent=5 // pred_fallthru
      _
    %p237 = scmp.le.s32.totalorder 1, %s13
    %p238 = scmp.lt.s32.totalorder %s13, 3
    %p239 = pnand %p237, %p238
    %p240 = pneg %p239
    // Predicated region
    $region45: #{tpu_custom_call.1} parent=5 // pred_check
      _
    $region46: #{tpu_custom_call.1} parent=5 // pred_check_branch
      %242 = sbr.rel (%p239) target = $region48
    $region47: #{tpu_custom_call.1} parent=5 // pred_region
      %s243 = ssub.s32 %s13, 1
      %s244 = smul.u32 16, %s18
      %p245 = scmp.lt.s32.totalorder %s244, 31
      %s246 = scalar_select %p245, %s244, 31
      %s247 = smul.addr %s246, 8
      %s248 = scalar_lea.vmem %s0, %s247
      %p249 = pneg %p39
      %p250 = pneg %p36
      %p251 = pneg %p60
      %p252 = pneg %p57
      %p253 = pneg %p81
      %p254 = pneg %p78
      %p255 = pneg %p102
      %p256 = pneg %p99
      %p257 = pneg %p123
      %p258 = pneg %p120
      %p259 = pneg %p144
      %p260 = pneg %p141
      %p261 = pneg %p165
      %p262 = pneg %p162
      %p263 = pneg %p191
      %p264 = pneg %p188
      %s265 = smul.u32 16, %s18
      %p266 = scmp.lt.s32.totalorder %s265, 31
      %s267 = scalar_select %p266, %s265, 31
      %s268 = smul.addr %s267, 8
      %s269 = scalar_lea.vmem %s7, %s268
      %s270 = smul.u32 16, %s18
      %p271 = scmp.lt.s32.totalorder %s270, 31
      %s272 = scalar_select %p271, %s270, 31
      %s273 = smul.addr %s272, 8
      %s274 = scalar_lea.vmem %s0, %s273
      %s275 = smul.u32 16, %s18
      %s276 = smul.u32 16, %s18
      %p277 = scmp.lt.s32.totalorder %s276, 31
      %s278 = scalar_select %p277, %s276, 31
      %s279 = smul.addr %s278, 8
      %s280 = scalar_lea.vmem %s7, %s279
      %s281 = smul.u32 16, %s18
      %v283 = vld [vmem:[%s274] sm:$0xff]
      %v284 = vld [vmem:[%s274 + $0x8] sm:$0xff]
      %v285 = vld [vmem:[%s274 + $0x10] sm:$0xff]
      %v286 = vld [vmem:[%s274 + $0x18] sm:$0xff]
      %v287 = vld [vmem:[%s274 + $0x20] sm:$0xff]
      %v288 = vld [vmem:[%s274 + $0x28] sm:$0xff]
      %v289 = vld [vmem:[%s274 + $0x30] sm:$0xff]
      %v290 = vld [vmem:[%s274 + $0x38] sm:$0xff]
      %v291 = vld [vmem:[%s274 + $0x40] sm:$0xff]
      %v292 = vld [vmem:[%s274 + $0x48] sm:$0xff]
      %v293 = vld [vmem:[%s274 + $0x50] sm:$0xff]
      %v294 = vld [vmem:[%s274 + $0x58] sm:$0xff]
      %v295 = vld [vmem:[%s274 + $0x60] sm:$0xff]
      %v296 = vld [vmem:[%s274 + $0x68] sm:$0xff]
      %v297 = vld [vmem:[%s274 + $0x70] sm:$0xff]
      %v298 = vld [vmem:[%s274 + $0x78] sm:$0xff]
      %v299 = vpack.c.bf16 %v284, %v283
      %v300 = vpack.c.bf16 %v286, %v285
      %v301 = vpack.c.bf16 %v288, %v287
      %v302 = vpack.c.bf16 %v290, %v289
      %v303 = vpack.c.bf16 %v292, %v291
      %v304 = vpack.c.bf16 %v294, %v293
      %v305 = vpack.c.bf16 %v296, %v295
      %v306 = vpack.c.bf16 %v298, %v297
      %v307 = vld [vmem:[%s1] sm:$0x3]
      %v308 = vld [vmem:[%s2] sm:$0x1]
      %v310 = vlaneseq
      %v311 = vshrl.u32 %v310, 7
      %v312 = vsub.s32 0, %v311
      %v313 = vrot.slane %v308, %v312
      %vm315 = vcmask 31744
      %v317 = vsel %vm315, %v299, 0
      %v320 = vsel %vm315, %v300, 0
      %v323 = vsel %vm315, %v301, 0
      %v326 = vsel %vm315, %v302, 0
      %v329 = vsel %vm315, %v303, 0
      %v332 = vsel %vm315, %v304, 0
      %v335 = vsel %vm315, %v305, 0
      %v338 = vsel %vm315, %v306, 0
      %vm340 = vcmask 1041408
      %v342 = vsel %vm340, %v307, 0
      %344 = vmatprep.subr.bf16.mxu0 0
      %345 = vmatpush1.bf16.msra.mxu0 %v342
      %346 = vmatprep.subr.bf16.mxu0 0
      %347 = vmatpush1.bf16.msra.mxu0 0
      %348 = vmatprep.subr.bf16.mxu0 0
      %349 = vmatpush1.bf16.msra.mxu0 0
      %350 = vmatprep.subr.bf16.mxu0 0
      %351 = vmatpush1.bf16.msra.mxu0 0
      %352 = vmatprep.subr.bf16.mxu0 0
      %353 = vmatpush1.bf16.msra.mxu0 0
      %354 = vmatprep.subr.bf16.mxu0 0
      %355 = vmatpush1.bf16.msra.mxu0 0
      %356 = vmatprep.subr.bf16.mxu0 0
      %357 = vmatpush1.bf16.msra.mxu0 0
      %358 = vmatprep.subr.bf16.mxu0 0
      %359 = vmatpush1.bf16.msra.mxu0 0
      %360 = vmatprep.subr.bf16.mxu0 0
      %361 = vmatpush1.bf16.msra.mxu0 0
      %362 = vmatprep.subr.bf16.mxu0 0
      %363 = vmatpush1.bf16.msra.mxu0 0
      %364 = vmatprep.subr.bf16.mxu0 0
      %365 = vmatpush1.bf16.msra.mxu0 0
      %366 = vmatprep.subr.bf16.mxu0 0
      %367 = vmatpush1.bf16.msra.mxu0 0
      %368 = vmatprep.subr.bf16.mxu0 0
      %369 = vmatpush1.bf16.msra.mxu0 0
      %370 = vmatprep.subr.bf16.mxu0 0
      %371 = vmatpush1.bf16.msra.mxu0 0
      %372 = vmatprep.subr.bf16.mxu0 0
      %373 = vmatpush1.bf16.msra.mxu0 0
      %374 = vmatprep.subr.bf16.mxu0 0
      %375 = vmatpush1.bf16.msra.mxu0 0
      %376 = vmatprep.mubr.bf16.mxu0 0
      %377 = vmatmul.mubr.bf16.gmra.mrb[0].mxu0 %v317
      %v378 = vpop.f32.mrb[0].mxu0
      %v379 = vadd.f32 %v313, %v378
      %v380 = vpop.f32.mrb[0].mxu0
      %v381 = vpop.f32.mrb[0].mxu0
      %v382 = vadd.f32 %v313, %v381
      %v383 = vpop.f32.mrb[0].mxu0
      %384 = vmatprep.mubr.bf16.mxu0 0
      %385 = vmatmul.mubr.bf16.gmra.mrb[0].mxu0 %v320
      %v386 = vpop.f32.mrb[0].mxu0
      %v387 = vadd.f32 %v313, %v386
      %v388 = vpop.f32.mrb[0].mxu0
      %v389 = vpop.f32.mrb[0].mxu0
      %v390 = vadd.f32 %v313, %v389
      %v391 = vpop.f32.mrb[0].mxu0
      %392 = vmatprep.mubr.bf16.mxu0 0
      %393 = vmatmul.mubr.bf16.gmra.mrb[0].mxu0 %v323
      %v394 = vpop.f32.mrb[0].mxu0
      %v395 = vadd.f32 %v313, %v394
      %v396 = vpop.f32.mrb[0].mxu0
      %v397 = vpop.f32.mrb[0].mxu0
      %v398 = vadd.f32 %v313, %v397
      %v399 = vpop.f32.mrb[0].mxu0
      %400 = vmatprep.mubr.bf16.mxu0 0
      %401 = vmatmul.mubr.bf16.gmra.mrb[0].mxu0 %v326
      %v402 = vpop.f32.mrb[0].mxu0
      %v403 = vadd.f32 %v313, %v402
      %v404 = vpop.f32.mrb[0].mxu0
      %v405 = vpop.f32.mrb[0].mxu0
      %v406 = vadd.f32 %v313, %v405
      %v407 = vpop.f32.mrb[0].mxu0
      %408 = vmatprep.mubr.bf16.mxu0 0
      %409 = vmatmul.mubr.bf16.gmra.mrb[0].mxu0 %v329
      %v410 = vpop.f32.mrb[0].mxu0
      %v411 = vadd.f32 %v313, %v410
      %v412 = vpop.f32.mrb[0].mxu0
      %v413 = vpop.f32.mrb[0].mxu0
      %v414 = vadd.f32 %v313, %v413
      %v415 = vpop.f32.mrb[0].mxu0
      %416 = vmatprep.mubr.bf16.mxu0 0
      %417 = vmatmul.mubr.bf16.gmra.mrb[0].mxu0 %v332
      %v418 = vpop.f32.mrb[0].mxu0
      %v419 = vadd.f32 %v313, %v418
      %v420 = vpop.f32.mrb[0].mxu0
      %v421 = vpop.f32.mrb[0].mxu0
      %v422 = vadd.f32 %v313, %v421
      %v423 = vpop.f32.mrb[0].mxu0
      %424 = vmatprep.mubr.bf16.mxu0 0
      %425 = vmatmul.mubr.bf16.gmra.mrb[0].mxu0 %v335
      %v426 = vpop.f32.mrb[0].mxu0
      %v427 = vadd.f32 %v313, %v426
      %v428 = vpop.f32.mrb[0].mxu0
      %v429 = vpop.f32.mrb[0].mxu0
      %v430 = vadd.f32 %v313, %v429
      %v431 = vpop.f32.mrb[0].mxu0
      %432 = vmatprep.mubr.bf16.mxu0 0
      %433 = vmatmul.mubr.bf16.gmra.mrb[0].mxu0 %v338
      %v434 = vpop.f32.mrb[0].mxu0
      %v435 = vadd.f32 %v313, %v434
      %v436 = vpop.f32.mrb[0].mxu0
      %v437 = vpop.f32.mrb[0].mxu0
      %v438 = vadd.f32 %v313, %v437
      %v439 = vpop.f32.mrb[0].mxu0
      %440 = vdwg.mxu0
      %v441 = vmax.f32 %v379, 0.0
      %v442 = vmax.f32 %v382, 0.0
      %v443 = vmax.f32 %v387, 0.0
      %v444 = vmax.f32 %v390, 0.0
      %v445 = vmax.f32 %v395, 0.0
      %v446 = vmax.f32 %v398, 0.0
      %v447 = vmax.f32 %v403, 0.0
      %v448 = vmax.f32 %v406, 0.0
      %v449 = vmax.f32 %v411, 0.0
      %v450 = vmax.f32 %v414, 0.0
      %v451 = vmax.f32 %v419, 0.0
      %v452 = vmax.f32 %v422, 0.0
      %v453 = vmax.f32 %v427, 0.0
      %v454 = vmax.f32 %v430, 0.0
      %v455 = vmax.f32 %v435, 0.0
      %v456 = vmax.f32 %v438, 0.0
      %v457 = vpack.c.bf16 %v442, %v441
      %v458 = vpack.c.bf16 %v444, %v443
      %v459 = vpack.c.bf16 %v446, %v445
      %v460 = vpack.c.bf16 %v448, %v447
      %v461 = vpack.c.bf16 %v450, %v449
      %v462 = vpack.c.bf16 %v452, %v451
      %v463 = vpack.c.bf16 %v454, %v453
      %v464 = vpack.c.bf16 %v456, %v455
      %v465 = vld [vmem:[%s3] sm:$0xf]
      %v466 = vld [vmem:[%s3 + $0x4] sm:$0xf]
      %v467 = vld [vmem:[%s3 + $0x8] sm:$0xf]
      %v468 = vld [vmem:[%s3 + $0xc] sm:$0xf]
      %v469 = vld [vmem:[%s3 + $0x10] sm:$0xf]
      %v470 = vld [vmem:[%s3 + $0x14] sm:$0xf]
      %v471 = vld [vmem:[%s3 + $0x18] sm:$0xf]
      %v472 = vld [vmem:[%s3 + $0x1c] sm:$0xf]
      %v473 = vld [vmem:[%s3 + $0x20] sm:$0xf]
      %v474 = vld [vmem:[%s3 + $0x24] sm:$0xf]
      %v475 = vld [vmem:[%s3 + $0x28] sm:$0xf]
      %v476 = vld [vmem:[%s3 + $0x2c] sm:$0xf]
      %v477 = vld [vmem:[%s3 + $0x30] sm:$0xf]
      %v478 = vld [vmem:[%s3 + $0x34] sm:$0xf]
      %v479 = vld [vmem:[%s3 + $0x38] sm:$0xf]
      %v480 = vld [vmem:[%s3 + $0x3c] sm:$0xf]
      %v481 = vld [vmem:[%s4] sm:$0x1]
      %v483 = vlaneseq
      %v484 = vshrl.u32 %v483, 7
      %v485 = vsub.s32 0, %v484
      %v486 = vrot.slane %v481, %v485
      %v504 = vunpack.c.l.b16 %v465
      %v505 = vunpack.c.l.b16 %v466
      %v506 = vunpack.c.l.b16 %v467
      %v507 = vunpack.c.l.b16 %v468
      %v508 = vunpack.c.l.b16 %v469
      %v509 = vunpack.c.l.b16 %v470
      %v510 = vunpack.c.l.b16 %v471
      %v511 = vunpack.c.l.b16 %v472
      %v512 = vunpack.c.l.b16 %v473
      %v513 = vunpack.c.l.b16 %v474
      %v514 = vunpack.c.l.b16 %v475
      %v515 = vunpack.c.l.b16 %v476
      %v516 = vunpack.c.l.b16 %v477
      %v517 = vunpack.c.l.b16 %v478
      %v518 = vunpack.c.l.b16 %v479
      %v519 = vunpack.c.l.b16 %v480
      %v520 = vpack.c.b16 %v505, %v504
      %v521 = vpack.c.b16 %v507, %v506
      %v522 = vpack.c.b16 %v509, %v508
      %v523 = vpack.c.b16 %v511, %v510
      %v524 = vpack.c.b16 %v513, %v512
      %v525 = vpack.c.b16 %v515, %v514
      %v526 = vpack.c.b16 %v517, %v516
      %v527 = vpack.c.b16 %v519, %v518
      %536 = vmatprep.subr.bf16.mxu0 0
      %537 = vmatpush1.bf16.msra.mxu0 %v520
      %538 = vmatprep.subr.bf16.mxu0 0
      %539 = vmatpush1.bf16.msra.mxu0 %v521
      %540 = vmatprep.subr.bf16.mxu0 0
      %541 = vmatpush1.bf16.msra.mxu0 %v522
      %542 = vmatprep.subr.bf16.mxu0 0
      %543 = vmatpush1.bf16.msra.mxu0 %v523
      %544 = vmatprep.subr.bf16.mxu0 0
      %545 = vmatpush1.bf16.msra.mxu0 %v524
      %546 = vmatprep.subr.bf16.mxu0 0
      %547 = vmatpush1.bf16.msra.mxu0 %v525
      %548 = vmatprep.subr.bf16.mxu0 0
      %549 = vmatpush1.bf16.msra.mxu0 %v526
      %550 = vmatprep.subr.bf16.mxu0 0
      %551 = vmatpush1.bf16.msra.mxu0 %v527
      %552 = vmatprep.subr.bf16.mxu0 0
      %553 = vmatpush1.bf16.msra.mxu0 0
      %554 = vmatprep.subr.bf16.mxu0 0
      %555 = vmatpush1.bf16.msra.mxu0 0
      %556 = vmatprep.subr.bf16.mxu0 0
      %557 = vmatpush1.bf16.msra.mxu0 0
      %558 = vmatprep.subr.bf16.mxu0 0
      %559 = vmatpush1.bf16.msra.mxu0 0
      %560 = vmatprep.subr.bf16.mxu0 0
      %561 = vmatpush1.bf16.msra.mxu0 0
      %562 = vmatprep.subr.bf16.mxu0 0
      %563 = vmatpush1.bf16.msra.mxu0 0
      %564 = vmatprep.subr.bf16.mxu0 0
      %565 = vmatpush1.bf16.msra.mxu0 0
      %566 = vmatprep.subr.bf16.mxu0 0
      %567 = vmatpush1.bf16.msra.mxu0 0
      %568 = vmatprep.mubr.bf16.mxu0 0
      %569 = vmatmul.mubr.bf16.gmra.mrb[0].mxu0 %v457
      %v570 = vpop.f32.mrb[0].mxu0
      %v571 = vadd.f32 %v486, %v570
      %v572 = vpop.f32.mrb[0].mxu0
      %v573 = vpop.f32.mrb[0].mxu0
      %v574 = vadd.f32 %v486, %v573
      %v575 = vpop.f32.mrb[0].mxu0
      %576 = vmatprep.mubr.bf16.mxu0 0
      %577 = vmatmul.mubr.bf16.gmra.mrb[0].mxu0 %v458
      %v578 = vpop.f32.mrb[0].mxu0
      %v579 = vadd.f32 %v486, %v578
      %v580 = vpop.f32.mrb[0].mxu0
      %v581 = vpop.f32.mrb[0].mxu0
      %v582 = vadd.f32 %v486, %v581
      %v583 = vpop.f32.mrb[0].mxu0
      %584 = vmatprep.mubr.bf16.mxu0 0
      %585 = vmatmul.mubr.bf16.gmra.mrb[0].mxu0 %v459
      %v586 = vpop.f32.mrb[0].mxu0
      %v587 = vadd.f32 %v486, %v586
      %v588 = vpop.f32.mrb[0].mxu0
      %v589 = vpop.f32.mrb[0].mxu0
      %v590 = vadd.f32 %v486, %v589
      %v591 = vpop.f32.mrb[0].mxu0
      %592 = vmatprep.mubr.bf16.mxu0 0
      %593 = vmatmul.mubr.bf16.gmra.mrb[0].mxu0 %v460
      %v594 = vpop.f32.mrb[0].mxu0
      %v595 = vadd.f32 %v486, %v594
      %v596 = vpop.f32.mrb[0].mxu0
      %v597 = vpop.f32.mrb[0].mxu0
      %v598 = vadd.f32 %v486, %v597
      %v599 = vpop.f32.mrb[0].mxu0
      %600 = vmatprep.mubr.bf16.mxu0 0
      %601 = vmatmul.mubr.bf16.gmra.mrb[0].mxu0 %v461
      %v602 = vpop.f32.mrb[0].mxu0
      %v603 = vadd.f32 %v486, %v602
      %v604 = vpop.f32.mrb[0].mxu0
      %v605 = vpop.f32.mrb[0].mxu0
      %v606 = vadd.f32 %v486, %v605
      %v607 = vpop.f32.mrb[0].mxu0
      %608 = vmatprep.mubr.bf16.mxu0 0
      %609 = vmatmul.mubr.bf16.gmra.mrb[0].mxu0 %v462
      %v610 = vpop.f32.mrb[0].mxu0
      %v611 = vadd.f32 %v486, %v610
      %v612 = vpop.f32.mrb[0].mxu0
      %v613 = vpop.f32.mrb[0].mxu0
      %v614 = vadd.f32 %v486, %v613
      %v615 = vpop.f32.mrb[0].mxu0
      %616 = vmatprep.mubr.bf16.mxu0 0
      %617 = vmatmul.mubr.bf16.gmra.mrb[0].mxu0 %v463
      %v618 = vpop.f32.mrb[0].mxu0
      %v619 = vadd.f32 %v486, %v618
      %v620 = vpop.f32.mrb[0].mxu0
      %v621 = vpop.f32.mrb[0].mxu0
      %v622 = vadd.f32 %v486, %v621
      %v623 = vpop.f32.mrb[0].mxu0
      %624 = vmatprep.mubr.bf16.mxu0 0
      %625 = vmatmul.mubr.bf16.gmra.mrb[0].mxu0 %v464
      %v626 = vpop.f32.mrb[0].mxu0
      %v627 = vadd.f32 %v486, %v626
      %v628 = vpop.f32.mrb[0].mxu0
      %v629 = vpop.f32.mrb[0].mxu0
      %v630 = vadd.f32 %v486, %v629
      %v631 = vpop.f32.mrb[0].mxu0
      %632 = vdwg.mxu0
      %v633 = vmax.f32 %v571, 0.0
      %v634 = vmax.f32 %v574, 0.0
      %v635 = vmax.f32 %v579, 0.0
      %v636 = vmax.f32 %v582, 0.0
      %v637 = vmax.f32 %v587, 0.0
      %v638 = vmax.f32 %v590, 0.0
      %v639 = vmax.f32 %v595, 0.0
      %v640 = vmax.f32 %v598, 0.0
      %v641 = vmax.f32 %v603, 0.0
      %v642 = vmax.f32 %v606, 0.0
      %v643 = vmax.f32 %v611, 0.0
      %v644 = vmax.f32 %v614, 0.0
      %v645 = vmax.f32 %v619, 0.0
      %v646 = vmax.f32 %v622, 0.0
      %v647 = vmax.f32 %v627, 0.0
      %v648 = vmax.f32 %v630, 0.0
      %v649 = vpack.c.bf16 %v634, %v633
      %v650 = vpack.c.bf16 %v636, %v635
      %v651 = vpack.c.bf16 %v638, %v637
      %v652 = vpack.c.bf16 %v640, %v639
      %v653 = vpack.c.bf16 %v642, %v641
      %v654 = vpack.c.bf16 %v644, %v643
      %v655 = vpack.c.bf16 %v646, %v645
      %v656 = vpack.c.bf16 %v648, %v647
      %v657 = vld [vmem:[%s5] sm:$0xf]
      %v658 = vld [vmem:[%s5 + $0x4] sm:$0xf]
      %v659 = vld [vmem:[%s5 + $0x8] sm:$0xf]
      %v660 = vld [vmem:[%s5 + $0xc] sm:$0xf]
      %v661 = vld [vmem:[%s5 + $0x10] sm:$0xf]
      %v662 = vld [vmem:[%s5 + $0x14] sm:$0xf]
      %v663 = vld [vmem:[%s5 + $0x18] sm:$0xf]
      %v664 = vld [vmem:[%s5 + $0x1c] sm:$0xf]
      %v665 = vld [vmem:[%s5 + $0x20] sm:$0xf]
      %v666 = vld [vmem:[%s5 + $0x24] sm:$0xf]
      %v667 = vld [vmem:[%s5 + $0x28] sm:$0xf]
      %v668 = vld [vmem:[%s5 + $0x2c] sm:$0xf]
      %v669 = vld [vmem:[%s5 + $0x30] sm:$0xf]
      %v670 = vld [vmem:[%s5 + $0x34] sm:$0xf]
      %v671 = vld [vmem:[%s5 + $0x38] sm:$0xf]
      %v672 = vld [vmem:[%s5 + $0x3c] sm:$0xf]
      %v689 = vunpack.c.l.b16 %v657
      %v690 = vunpack.c.l.b16 %v658
      %v691 = vunpack.c.l.b16 %v659
      %v692 = vunpack.c.l.b16 %v660
      %v693 = vunpack.c.l.b16 %v661
      %v694 = vunpack.c.l.b16 %v662
      %v695 = vunpack.c.l.b16 %v663
      %v696 = vunpack.c.l.b16 %v664
      %v697 = vunpack.c.l.b16 %v665
      %v698 = vunpack.c.l.b16 %v666
      %v699 = vunpack.c.l.b16 %v667
      %v700 = vunpack.c.l.b16 %v668
      %v701 = vunpack.c.l.b16 %v669
      %v702 = vunpack.c.l.b16 %v670
      %v703 = vunpack.c.l.b16 %v671
      %v704 = vunpack.c.l.b16 %v672
      %v705 = vpack.c.b16 %v690, %v689
      %v706 = vpack.c.b16 %v692, %v691
      %v707 = vpack.c.b16 %v694, %v693
      %v708 = vpack.c.b16 %v696, %v695
      %v709 = vpack.c.b16 %v698, %v697
      %v710 = vpack.c.b16 %v700, %v699
      %v711 = vpack.c.b16 %v702, %v701
      %v712 = vpack.c.b16 %v704, %v703
      %721 = vmatprep.subr.bf16.mxu0 0
      %722 = vmatpush1.bf16.msra.mxu0 %v705
      %723 = vmatprep.subr.bf16.mxu0 0
      %724 = vmatpush1.bf16.msra.mxu0 %v706
      %725 = vmatprep.subr.bf16.mxu0 0
      %726 = vmatpush1.bf16.msra.mxu0 %v707
      %727 = vmatprep.subr.bf16.mxu0 0
      %728 = vmatpush1.bf16.msra.mxu0 %v708
      %729 = vmatprep.subr.bf16.mxu0 0
      %730 = vmatpush1.bf16.msra.mxu0 %v709
      %731 = vmatprep.subr.bf16.mxu0 0
      %732 = vmatpush1.bf16.msra.mxu0 %v710
      %733 = vmatprep.subr.bf16.mxu0 0
      %734 = vmatpush1.bf16.msra.mxu0 %v711
      %735 = vmatprep.subr.bf16.mxu0 0
      %736 = vmatpush1.bf16.msra.mxu0 %v712
      %737 = vmatprep.subr.bf16.mxu0 0
      %738 = vmatpush1.bf16.msra.mxu0 0
      %739 = vmatprep.subr.bf16.mxu0 0
      %740 = vmatpush1.bf16.msra.mxu0 0
      %741 = vmatprep.subr.bf16.mxu0 0
      %742 = vmatpush1.bf16.msra.mxu0 0
      %743 = vmatprep.subr.bf16.mxu0 0
      %744 = vmatpush1.bf16.msra.mxu0 0
      %745 = vmatprep.subr.bf16.mxu0 0
      %746 = vmatpush1.bf16.msra.mxu0 0
      %747 = vmatprep.subr.bf16.mxu0 0
      %748 = vmatpush1.bf16.msra.mxu0 0
      %749 = vmatprep.subr.bf16.mxu0 0
      %750 = vmatpush1.bf16.msra.mxu0 0
      %751 = vmatprep.subr.bf16.mxu0 0
      %752 = vmatpush1.bf16.msra.mxu0 0
      %753 = vmatprep.mubr.bf16.mxu0 0
      %754 = vmatmul.mubr.bf16.gmra.mrb[0].mxu0 %v649
      %v755 = vpop.f32.mrb[0].mxu0
      %v756 = vadd.f32 0.0, %v755
      %v757 = vpop.f32.mrb[0].mxu0
      %v758 = vpop.f32.mrb[0].mxu0
      %v759 = vadd.f32 0.0, %v758
      %v760 = vpop.f32.mrb[0].mxu0
      %761 = vmatprep.mubr.bf16.mxu0 0
      %762 = vmatmul.mubr.bf16.gmra.mrb[0].mxu0 %v650
      %v763 = vpop.f32.mrb[0].mxu0
      %v764 = vadd.f32 0.0, %v763
      %v765 = vpop.f32.mrb[0].mxu0
      %v766 = vpop.f32.mrb[0].mxu0
      %v767 = vadd.f32 0.0, %v766
      %v768 = vpop.f32.mrb[0].mxu0
      %769 = vmatprep.mubr.bf16.mxu0 0
      %770 = vmatmul.mubr.bf16.gmra.mrb[0].mxu0 %v651
      %v771 = vpop.f32.mrb[0].mxu0
      %v772 = vadd.f32 0.0, %v771
      %v773 = vpop.f32.mrb[0].mxu0
      %v774 = vpop.f32.mrb[0].mxu0
      %v775 = vadd.f32 0.0, %v774
      %v776 = vpop.f32.mrb[0].mxu0
      %777 = vmatprep.mubr.bf16.mxu0 0
      %778 = vmatmul.mubr.bf16.gmra.mrb[0].mxu0 %v652
      %v779 = vpop.f32.mrb[0].mxu0
      %v780 = vadd.f32 0.0, %v779
      %v781 = vpop.f32.mrb[0].mxu0
      %v782 = vpop.f32.mrb[0].mxu0
      %v783 = vadd.f32 0.0, %v782
      %v784 = vpop.f32.mrb[0].mxu0
      %785 = vmatprep.mubr.bf16.mxu0 0
      %786 = vmatmul.mubr.bf16.gmra.mrb[0].mxu0 %v653
      %v787 = vpop.f32.mrb[0].mxu0
      %v788 = vadd.f32 0.0, %v787
      %v789 = vpop.f32.mrb[0].mxu0
      %v790 = vpop.f32.mrb[0].mxu0
      %v791 = vadd.f32 0.0, %v790
      %v792 = vpop.f32.mrb[0].mxu0
      %793 = vmatprep.mubr.bf16.mxu0 0
      %794 = vmatmul.mubr.bf16.gmra.mrb[0].mxu0 %v654
      %v795 = vpop.f32.mrb[0].mxu0
      %v796 = vadd.f32 0.0, %v795
      %v797 = vpop.f32.mrb[0].mxu0
      %v798 = vpop.f32.mrb[0].mxu0
      %v799 = vadd.f32 0.0, %v798
      %v800 = vpop.f32.mrb[0].mxu0
      %801 = vmatprep.mubr.bf16.mxu0 0
      %802 = vmatmul.mubr.bf16.gmra.mrb[0].mxu0 %v655
      %v803 = vpop.f32.mrb[0].mxu0
      %v804 = vadd.f32 0.0, %v803
      %v805 = vpop.f32.mrb[0].mxu0
      %v806 = vpop.f32.mrb[0].mxu0
      %v807 = vadd.f32 0.0, %v806
      %v808 = vpop.f32.mrb[0].mxu0
      %809 = vmatprep.mubr.bf16.mxu0 0
      %810 = vmatmul.mubr.bf16.gmra.mrb[0].mxu0 %v656
      %v811 = vpop.f32.mrb[0].mxu0
      %v812 = vadd.f32 0.0, %v811
      %v813 = vpop.f32.mrb[0].mxu0
      %v814 = vpop.f32.mrb[0].mxu0
      %v815 = vadd.f32 0.0, %v814
      %v816 = vpop.f32.mrb[0].mxu0
      %817 = vdwg.mxu0
      %v818 = vld [vmem:[%s6] sm:$0x1]
      %v820 = vlaneseq
      %v821 = vshrl.u32 %v820, 7
      %v822 = vsub.s32 0, %v821
      %v823 = vrot.slane %v818, %v822
      %v825 = vadd.f32 %v756, %v823
      %v826 = vadd.f32 %v759, %v823
      %v827 = vadd.f32 %v764, %v823
      %v828 = vadd.f32 %v767, %v823
      %v829 = vadd.f32 %v772, %v823
      %v830 = vadd.f32 %v775, %v823
      %v831 = vadd.f32 %v780, %v823
      %v832 = vadd.f32 %v783, %v823
      %v833 = vadd.f32 %v788, %v823
      %v834 = vadd.f32 %v791, %v823
      %v835 = vadd.f32 %v796, %v823
      %v836 = vadd.f32 %v799, %v823
      %v837 = vadd.f32 %v804, %v823
      %v838 = vadd.f32 %v807, %v823
      %v839 = vadd.f32 %v812, %v823
      %v840 = vadd.f32 %v815, %v823
      %vm841 = vcmask 15360
      %842 = vst.msk [vmem:[%s280] sm:$0xff] %vm841, %v825
      %843 = vst.msk [vmem:[%s280 + $0x8] sm:$0xff] %vm841, %v826
      %844 = vst.msk [vmem:[%s280 + $0x10] sm:$0xff] %vm841, %v827
      %845 = vst.msk [vmem:[%s280 + $0x18] sm:$0xff] %vm841, %v828
      %846 = vst.msk [vmem:[%s280 + $0x20] sm:$0xff] %vm841, %v829
      %847 = vst.msk [vmem:[%s280 + $0x28] sm:$0xff] %vm841, %v830
      %848 = vst.msk [vmem:[%s280 + $0x30] sm:$0xff] %vm841, %v831
      %849 = vst.msk [vmem:[%s280 + $0x38] sm:$0xff] %vm841, %v832
      %850 = vst.msk [vmem:[%s280 + $0x40] sm:$0xff] %vm841, %v833
      %851 = vst.msk [vmem:[%s280 + $0x48] sm:$0xff] %vm841, %v834
      %852 = vst.msk [vmem:[%s280 + $0x50] sm:$0xff] %vm841, %v835
      %853 = vst.msk [vmem:[%s280 + $0x58] sm:$0xff] %vm841, %v836
      %854 = vst.msk [vmem:[%s280 + $0x60] sm:$0xff] %vm841, %v837
      %855 = vst.msk [vmem:[%s280 + $0x68] sm:$0xff] %vm841, %v838
      %856 = vst.msk [vmem:[%s280 + $0x70] sm:$0xff] %vm841, %v839
      %857 = vst.msk [vmem:[%s280 + $0x78] sm:$0xff] %vm841, %v840
      %s858 = smul.u32 16, %s18
      %p859 = scmp.lt.s32.totalorder %s858, 31
      %s860 = scalar_select %p859, %s858, 31
      %s861 = smul.addr %s860, 8
      %s862 = scalar_lea.vmem %s7, %s861
      // Predicated region
      $region49: #{tpu_custom_call.1} parent=47 // pred_check
        %p863 = pneg %p188
      $region50: #{tpu_custom_call.1} parent=47 // pred_check_branch
        %865 = sbr.rel (%p863) target = $region52
      $region51: #{tpu_custom_call.1} parent=47 // pred_region
        %s866 = smul.u32 16, %s18
      $region52: #{tpu_custom_call.1} parent=47 // pred_fallthru
        _
    $region48: #{tpu_custom_call.1} parent=5 // pred_fallthru
      _
    %p867 = scmp.le.s32.totalorder 2, %s13
    // Predicated region
    $region53: #{tpu_custom_call.1} parent=5 // pred_check
      %p868 = pneg %p867
    $region54: #{tpu_custom_call.1} parent=5 // pred_check_branch
      %870 = sbr.rel (%p868) target = $region56
    $region55: #{tpu_custom_call.1} parent=5 // pred_region
      %s871 = ssub.s32 %s13, 2
      // Predicated region
      $region57: #{tpu_custom_call.1} parent=55 // pred_check
        %p872 = pneg %p194
      $region58: #{tpu_custom_call.1} parent=55 // pred_check_branch
        %874 = sbr.rel (%p872) target = $region60
      $region59: #{tpu_custom_call.1} parent=55 // pred_region
        %s875 = smul.u32 16, %s19
        %p876 = scmp.lt.s32.totalorder %s875, 31
        %s877 = scalar_select %p876, %s875, 31
        %s878 = smul.addr %s877, 8
        %s879 = scalar_lea.vmem %s7, %s878
      $region60: #{tpu_custom_call.1} parent=55 // pred_fallthru
        _
    $region56: #{tpu_custom_call.1} parent=5 // pred_fallthru
      _
  $region6: #{tpu_custom_call.1} parent=0 // loop_footer
    %s17 = sadd.s32 1, %s13
  $region7: #{tpu_custom_call.1} parent=0 // loop_footer_branch
    %12 = sbr.rel target = $region3
  $region8: #{tpu_custom_call.1} parent=0 // loop_exit
    _

</llo_original>
